<compile_context>
chip_gen: v7x
topology: tpu7x:2x2x1
jax: 0.10.0
libtpu: 0.0.40
codegen_flags: <defaults>
</compile_context>

<pallas_src>
import functools

import jax
import jax.numpy as jnp
from jax.experimental import pallas as pl
from jax.experimental.pallas import tpu as pltpu

INPUT_DIM = 768
HIDDEN_DIM = 256
NUM_CLASSES = 8

_LANE = 128             # pad the 8-wide class dim up to this for dense stores
_SUBLANE = 16           # bf16 sublane packing; batch tiles are multiples of this
_MIN_PALLAS_BATCH = 16  # below one sublane tile, plain XLA fusion is as fast


def _mlp_kernel(x_ref, w1_ref, b1_ref, w2_ref, b2_ref, w3_ref, b3_ref, o_ref):
    # Layer 1: [tb, 768]bf16 @ [768, 256]bf16 -> f32 accumulate, +bias, ReLU.
    x = x_ref[...].astype(jnp.bfloat16)          # in-register cast (VPU)
    h1 = jnp.dot(x, w1_ref[...], preferred_element_type=jnp.float32)
    h1 = jnp.maximum(h1 + b1_ref[...], 0.0)
    # (Dropout p=0.3 -> identity in eval mode.)

    # Layer 2: [tb, 256] @ [256, 128] -> f32 accumulate, +bias, ReLU.
    h2 = jnp.dot(h1.astype(jnp.bfloat16), w2_ref[...],
                 preferred_element_type=jnp.float32)
    h2 = jnp.maximum(h2 + b2_ref[...], 0.0)

    # Layer 3: [tb, 128] @ [128, 128] (classes zero-padded 8 -> 128 so the
    # output store is lane-dense / unmasked).
    out = jnp.dot(h2.astype(jnp.bfloat16), w3_ref[...],
                  preferred_element_type=jnp.float32)
    o_ref[...] = (out + b3_ref[...]).astype(o_ref.dtype)


def reference_forward(x, w1, b1, w2, b2, w3, b3, *, mxu_dtype=jnp.float32):
    """Pure-jnp reference.  mxu_dtype=jnp.bfloat16 mirrors the kernel's casts."""
    def mm(a, w):
        return jnp.dot(a.astype(mxu_dtype), w.astype(mxu_dtype),
                       preferred_element_type=jnp.float32)
    h1 = jnp.maximum(mm(x, w1) + b1, 0.0)
    h2 = jnp.maximum(mm(h1, w2) + b2, 0.0)
    return mm(h2, w3) + b3


def _choose_block_b(B):
    """256-512 row tiles for MXU row occupancy; keep >=2 grid steps when
    possible (v7x has 2 TensorCores); round to the bf16 sublane multiple."""
    bb = min(512, B)
    if B >= 2 * _SUBLANE:
        bb = min(bb, -(-B // 2))        # at least 2 parallel grid steps
    bb = -(-bb // _SUBLANE) * _SUBLANE  # round up to a multiple of 16
    return max(bb, _SUBLANE)


@functools.partial(jax.jit, static_argnames=("block_b",))
def emotion_classifier_forward(x, w1, b1, w2, b2, w3, b3, *, block_b=None):
    """x: [B, 768] float32.  Returns logits [B, 8] float32."""
    B, D = x.shape
    assert D == INPUT_DIM
    h1 = w1.shape[1]   # 256
    h2 = w2.shape[1]   # 128
    nc = w3.shape[1]   # 8

    # Tiny batches: the whole net is a few MFLOP; kernel launch + pipeline
    # setup dominates, so let XLA fuse it instead.
    if block_b is None and B < _MIN_PALLAS_BATCH:
        return reference_forward(x, w1, b1, w2, b2, w3, b3)

    if block_b is None:
        block_b = _choose_block_b(B)

    # bf16 MXU operands for the weights (one-time cast, reused every step);
    # biases stay f32; x stays f32 in HBM and is cast inside the kernel.
    w1_bf = w1.astype(jnp.bfloat16)
    w2_bf = w2.astype(jnp.bfloat16)

    # Zero-pad the final layer's output dim 8 -> 128 for lane-dense stores.
    nc_pad = -(-nc // _LANE) * _LANE
    w3_p = jnp.zeros((h2, nc_pad), jnp.bfloat16).at[:, :nc].set(
        w3.astype(jnp.bfloat16))
    b3_p = jnp.zeros((1, nc_pad), jnp.float32).at[:, :nc].set(b3)

    # Ragged last tile handled by Pallas (masked edge stores); no jnp.pad copy.
    grid = (pl.cdiv(B, block_b),)

    out = pl.pallas_call(
        _mlp_kernel,
        out_shape=jax.ShapeDtypeStruct((B, nc_pad), jnp.float32),
        grid_spec=pltpu.PrefetchScalarGridSpec(
            num_scalar_prefetch=0,
            grid=grid,
            in_specs=[
                # activations: tiled over batch (f32, cast to bf16 in-kernel)
                pl.BlockSpec((block_b, D), lambda i: (i, 0)),
                # weights / biases: full arrays, resident every grid step
                pl.BlockSpec((D, h1), lambda i: (0, 0)),
                pl.BlockSpec((1, h1), lambda i: (0, 0)),
                pl.BlockSpec((h1, h2), lambda i: (0, 0)),
                pl.BlockSpec((1, h2), lambda i: (0, 0)),
                pl.BlockSpec((h2, nc_pad), lambda i: (0, 0)),
                pl.BlockSpec((1, nc_pad), lambda i: (0, 0)),
            ],
            out_specs=pl.BlockSpec((block_b, nc_pad), lambda i: (i, 0)),
        ),
        compiler_params=pltpu.CompilerParams(
            dimension_semantics=("parallel",),
        ),
    )(x, w1_bf, b1, w2_bf, b2, w3_p, b3_p)

    return out[:, :nc]


def init_params(key):
    """Deterministic init mirroring nn.Linear's U(-1/sqrt(fan_in), 1/sqrt(fan_in)).

    Weights are stored as [in_features, out_features] (transposed vs PyTorch).
    """
    dims = [(INPUT_DIM, HIDDEN_DIM), (HIDDEN_DIM, HIDDEN_DIM // 2),
            (HIDDEN_DIM // 2, NUM_CLASSES)]
    params = []
    for (fan_in, fan_out) in dims:
        key, kw, kb = jax.random.split(key, 3)
        bound = 1.0 / (fan_in ** 0.5)
        w = jax.random.uniform(kw, (fan_in, fan_out), jnp.float32, -bound, bound)
        b = jax.random.uniform(kb, (1, fan_out), jnp.float32, -bound, bound)
        params += [w, b]
    return tuple(params)


if __name__ == "__main__":
    key = jax.random.PRNGKey(0)
    key, kx = jax.random.split(key)

    B = 128  # small, but large enough to exercise the Pallas path (2 tiles)
    x = jax.random.normal(kx, (B, INPUT_DIM), jnp.float32)

    w1, b1, w2, b2, w3, b3 = init_params(key)

    out = emotion_classifier_forward(x, w1, b1, w2, b2, w3, b3)
    out = jax.block_until_ready(out)
    assert out.shape == (B, NUM_CLASSES)

    # Compare against a reference that uses the same bf16-operand / f32-acc
    # casts (tight), and against the full-f32 reference (loose, bf16 rounding).
    ref_bf16 = reference_forward(x, w1, b1, w2, b2, w3, b3,
                                 mxu_dtype=jnp.bfloat16)
    ref_f32 = reference_forward(x, w1, b1, w2, b2, w3, b3)
    assert jnp.allclose(out, ref_bf16, atol=2e-2, rtol=2e-2), \
        "mismatch vs bf16-matched reference"
    assert float(jnp.max(jnp.abs(out - ref_f32))) < 1e-1, \
        "mismatch vs f32 reference"

    print("KERNEL_OK")
</pallas_src>

<mosaic_0001>
module attributes {stable_mosaic.version = 11 : i64} {
  func.func @_mlp_kernel(%arg0: i32, %arg1: memref<64x768xf32, #tpu.memory_space<vmem>>, %arg2: memref<768x256xbf16, #tpu.memory_space<vmem>>, %arg3: memref<1x256xf32, #tpu.memory_space<vmem>>, %arg4: memref<256x128xbf16, #tpu.memory_space<vmem>>, %arg5: memref<1x128xf32, #tpu.memory_space<vmem>>, %arg6: memref<128x128xbf16, #tpu.memory_space<vmem>>, %arg7: memref<1x128xf32, #tpu.memory_space<vmem>>, %arg8: memref<64x128xf32, #tpu.memory_space<vmem>>) attributes {dimension_semantics = [#tpu.dimension_semantics<parallel>], iteration_bounds = array<i64: 2>, scalar_prefetch = 0 : i64, scratch_operands = 0 : i64, tpu.core_type = #tpu.core_type<tc>, window_params = [{transform_indices = @transform_0, window_bounds = array<i64: 64, 768>}, {pipeline_mode = #tpu.pipeline_mode<synchronous>, transform_indices = @transform_1, window_bounds = array<i64: 768, 256>}, {pipeline_mode = #tpu.pipeline_mode<synchronous>, transform_indices = @transform_2, window_bounds = array<i64: 1, 256>}, {pipeline_mode = #tpu.pipeline_mode<synchronous>, transform_indices = @transform_3, window_bounds = array<i64: 256, 128>}, {pipeline_mode = #tpu.pipeline_mode<synchronous>, transform_indices = @transform_4, window_bounds = array<i64: 1, 128>}, {pipeline_mode = #tpu.pipeline_mode<synchronous>, transform_indices = @transform_5, window_bounds = array<i64: 128, 128>}, {pipeline_mode = #tpu.pipeline_mode<synchronous>, transform_indices = @transform_6, window_bounds = array<i64: 1, 128>}, {transform_indices = @transform_7, window_bounds = array<i64: 64, 128>}]} {
    %c0 = arith.constant 0 : index
    %c0_0 = arith.constant 0 : index
    %0 = vector.load %arg1[%c0, %c0_0] : memref<64x768xf32, #tpu.memory_space<vmem>>, vector<64x768xf32>
    %1 = arith.truncf %0 : vector<64x768xf32> to vector<64x768xbf16>
    %c0_1 = arith.constant 0 : index
    %c0_2 = arith.constant 0 : index
    %2 = vector.load %arg2[%c0_1, %c0_2] : memref<768x256xbf16, #tpu.memory_space<vmem>>, vector<768x256xbf16>
    %cst = arith.constant dense<0.000000e+00> : vector<64x256xf32>
    %3 = tpu.matmul %1, %2, %cst {dimension_numbers = #tpu.dot_dimension_numbers<[1], [0], [0], [1], [0, 0, 1, 1], [], []>} : vector<64x768xbf16>, vector<768x256xbf16>, vector<64x256xf32> -> vector<64x256xf32>
    %c0_3 = arith.constant 0 : index
    %c0_4 = arith.constant 0 : index
    %4 = vector.load %arg3[%c0_3, %c0_4] : memref<1x256xf32, #tpu.memory_space<vmem>>, vector<1x256xf32>
    %5 = vector.broadcast %4 : vector<1x256xf32> to vector<64x256xf32>
    %6 = arith.addf %3, %5 : vector<64x256xf32>
    %cst_5 = arith.constant 0.000000e+00 : f32
    %7 = vector.broadcast %cst_5 : f32 to vector<64x256xf32>
    %8 = arith.maximumf %6, %7 : vector<64x256xf32>
    %9 = arith.truncf %8 : vector<64x256xf32> to vector<64x256xbf16>
    %c0_6 = arith.constant 0 : index
    %c0_7 = arith.constant 0 : index
    %10 = vector.load %arg4[%c0_6, %c0_7] : memref<256x128xbf16, #tpu.memory_space<vmem>>, vector<256x128xbf16>
    %cst_8 = arith.constant dense<0.000000e+00> : vector<64x128xf32>
    %11 = tpu.matmul %9, %10, %cst_8 {dimension_numbers = #tpu.dot_dimension_numbers<[1], [0], [0], [1], [0, 0, 1, 1], [], []>} : vector<64x256xbf16>, vector<256x128xbf16>, vector<64x128xf32> -> vector<64x128xf32>
    %c0_9 = arith.constant 0 : index
    %c0_10 = arith.constant 0 : index
    %12 = vector.load %arg5[%c0_9, %c0_10] : memref<1x128xf32, #tpu.memory_space<vmem>>, vector<1x128xf32>
    %13 = vector.broadcast %12 : vector<1x128xf32> to vector<64x128xf32>
    %14 = arith.addf %11, %13 : vector<64x128xf32>
    %cst_11 = arith.constant 0.000000e+00 : f32
    %15 = vector.broadcast %cst_11 : f32 to vector<64x128xf32>
    %16 = arith.maximumf %14, %15 : vector<64x128xf32>
    %17 = arith.truncf %16 : vector<64x128xf32> to vector<64x128xbf16>
    %c0_12 = arith.constant 0 : index
    %c0_13 = arith.constant 0 : index
    %18 = vector.load %arg6[%c0_12, %c0_13] : memref<128x128xbf16, #tpu.memory_space<vmem>>, vector<128x128xbf16>
    %cst_14 = arith.constant dense<0.000000e+00> : vector<64x128xf32>
    %19 = tpu.matmul %17, %18, %cst_14 {dimension_numbers = #tpu.dot_dimension_numbers<[1], [0], [0], [1], [0, 0, 1, 1], [], []>} : vector<64x128xbf16>, vector<128x128xbf16>, vector<64x128xf32> -> vector<64x128xf32>
    %c0_15 = arith.constant 0 : index
    %c0_16 = arith.constant 0 : index
    %20 = vector.load %arg7[%c0_15, %c0_16] : memref<1x128xf32, #tpu.memory_space<vmem>>, vector<1x128xf32>
    %21 = vector.broadcast %20 : vector<1x128xf32> to vector<64x128xf32>
    %22 = arith.addf %19, %21 : vector<64x128xf32>
    %c0_17 = arith.constant 0 : index
    %c0_18 = arith.constant 0 : index
    %23 = vector.load %arg8[%c0_17, %c0_18] : memref<64x128xf32, #tpu.memory_space<vmem>>, vector<64x128xf32>
    tpu.vector_store %arg8[%c0_17, %c0_18], %22 {strides = array<i32>} : memref<64x128xf32, #tpu.memory_space<vmem>>, vector<64x128xf32>,
    return
  }
  func.func @transform_0(%arg0: i32) -> (i32, i32) {
    %c0_i32 = arith.constant 0 : i32
    %c0_i32_0 = arith.constant 0 : i32
    return %arg0, %c0_i32 : i32, i32
  }
  func.func @transform_1(%arg0: i32) -> (i32, i32) {
    %c0_i32 = arith.constant 0 : i32
    %c0_i32_0 = arith.constant 0 : i32
    %c0_i32_1 = arith.constant 0 : i32
    return %c0_i32, %c0_i32_0 : i32, i32
  }
  func.func @transform_2(%arg0: i32) -> (i32, i32) {
    %c0_i32 = arith.constant 0 : i32
    %c0_i32_0 = arith.constant 0 : i32
    %c0_i32_1 = arith.constant 0 : i32
    return %c0_i32, %c0_i32_0 : i32, i32
  }
  func.func @transform_3(%arg0: i32) -> (i32, i32) {
    %c0_i32 = arith.constant 0 : i32
    %c0_i32_0 = arith.constant 0 : i32
    %c0_i32_1 = arith.constant 0 : i32
    return %c0_i32, %c0_i32_0 : i32, i32
  }
  func.func @transform_4(%arg0: i32) -> (i32, i32) {
    %c0_i32 = arith.constant 0 : i32
    %c0_i32_0 = arith.constant 0 : i32
    %c0_i32_1 = arith.constant 0 : i32
    return %c0_i32, %c0_i32_0 : i32, i32
  }
  func.func @transform_5(%arg0: i32) -> (i32, i32) {
    %c0_i32 = arith.constant 0 : i32
    %c0_i32_0 = arith.constant 0 : i32
    %c0_i32_1 = arith.constant 0 : i32
    return %c0_i32, %c0_i32_0 : i32, i32
  }
  func.func @transform_6(%arg0: i32) -> (i32, i32) {
    %c0_i32 = arith.constant 0 : i32
    %c0_i32_0 = arith.constant 0 : i32
    %c0_i32_1 = arith.constant 0 : i32
    return %c0_i32, %c0_i32_0 : i32, i32
  }
  func.func @transform_7(%arg0: i32) -> (i32, i32) {
    %c0_i32 = arith.constant 0 : i32
    %c0_i32_0 = arith.constant 0 : i32
    return %arg0, %c0_i32 : i32, i32
  }
}

</mosaic_0001>

<llo_original>
// kernel: emotion_classifier_forward.1
$region0: #{emotion_classifier_forward.1}
  #allocation0 [shape = 'u32[]', space=smem, size = 0x4, offset = 0x4, fixed_abs, tag = 'smem constant byte address 0x4 - core index']
  #allocation1 [shape = 'u32[144,128]{1,0:T(1,128)}', space=vmem, size = 0x12000, scoped, tag = 'internal scratch']
  %s0 = inlined_call_operand.vmem [shape: f32[128,768], index: 0, kind: input, shape index: {}]
  %s1 = inlined_call_operand.vmem [shape: bf16[768,256], index: 1, kind: input, shape index: {}]
  %s2 = inlined_call_operand.vmem [shape: f32[1,256], index: 2, kind: input, shape index: {}]
  %s3 = inlined_call_operand.vmem [shape: bf16[256,128], index: 3, kind: input, shape index: {}]
  %s4 = inlined_call_operand.vmem [shape: f32[1,128], index: 4, kind: input, shape index: {}]
  %s5 = inlined_call_operand.vmem [shape: bf16[128,128], index: 5, kind: input, shape index: {}]
  %s6 = inlined_call_operand.vmem [shape: f32[1,128], index: 6, kind: input, shape index: {}]
  %s7 = inlined_call_operand.vmem [shape: f32[128,128], index: 7, kind: output, shape index: {}]
  %s8 = sld [smem:[#allocation0]]
  $region61: #{emotion_classifier_forward.1} parent=0
    _
  %s10 = ssub.s32 1, %s8
  %s11 = scalar_select 0, %s10, %s8
  loop: start=0, step=1, limit=4
  $region2: #{emotion_classifier_forward.1} parent=0 // loop_pre_header
    _
  $region3: #{emotion_classifier_forward.1} parent=0 // loop_header
    %s13 = sphi 0, %s17
    %p14 = scmp.ge.s32.totalorder %s13, 4
    %s23 = sphi 0, %s25
    %s26 = sphi 0, %s23
    %s27 = sphi 0, %s26
    %s43 = sphi 0, %s27
    %s47 = sphi 0, %s47
    %s49 = sphi 0, %s47
    %s50 = sphi 0, %s49
    %s64 = sphi 0, %s50
    %s68 = sphi 0, %s68
    %s70 = sphi 0, %s68
    %s71 = sphi 0, %s70
    %s85 = sphi 0, %s71
    %s89 = sphi 0, %s89
    %s91 = sphi 0, %s89
    %s92 = sphi 0, %s91
    %s106 = sphi 0, %s92
    %s110 = sphi 0, %s110
    %s112 = sphi 0, %s110
    %s113 = sphi 0, %s112
    %s127 = sphi 0, %s113
    %s131 = sphi 0, %s131
    %s133 = sphi 0, %s131
    %s134 = sphi 0, %s133
    %s148 = sphi 0, %s134
    %s152 = sphi 0, %s152
    %s154 = sphi 0, %s152
    %s155 = sphi 0, %s154
    %s169 = sphi 0, %s155
    %s175 = sphi 0, %s177
    %s178 = sphi 0, %s175
    %s179 = sphi 0, %s178
    %s195 = sphi 0, %s179
  $region4: #{emotion_classifier_forward.1} parent=0 // loop_header_branch
    %16 = sbr.rel (%p14) target = $region8
  $region5: #{emotion_classifier_forward.1} parent=0 // loop_body
    %s18 = ssub.s32 %s13, 1
    %s19 = ssub.s32 %s13, 2
    %s20 = sadd.s32 %s13, 1
    %s21 = ssub.s32 %s13, %s20
    %p22 = scmp.eq.s32.totalorder %s21, 0
    %s24 = sadd.s32 %s23, 1
    %s25 = scalar_select %p22, %s23, %s24
    %p28 = pneg %p22
    %p29 = scmp.eq.s32.totalorder %s13, 1
    %p30 = por %p28, %p29
    %p31 = scmp.ne.s32.totalorder %s23, %s26
    %p32 = scmp.eq.s32.totalorder %s13, 0
    %p33 = por %p31, %p32
    %p34 = scmp.ne.s32.totalorder %s23, %s26
    %p35 = scmp.eq.s32.totalorder %s18, 1
    %p36 = por %p34, %p35
    %p37 = scmp.ne.s32.totalorder %s26, %s27
    %p38 = scmp.eq.s32.totalorder %s18, 0
    %p39 = por %p37, %p38
    %p40 = scmp.ne.s32.totalorder %s26, %s27
    %p41 = scmp.eq.s32.totalorder %s19, 1
    %p42 = por %p40, %p41
    %p44 = scmp.ne.s32.totalorder %s27, %s43
    %p45 = scmp.eq.s32.totalorder %s19, 0
    %p46 = por %p44, %p45
    %s48 = sadd.s32 %s47, 1
    %p51 = scmp.eq.s32.totalorder %s13, 1
    %p52 = scmp.ne.s32.totalorder %s47, %s49
    %p53 = scmp.eq.s32.totalorder %s13, 0
    %p54 = por %p52, %p53
    %p55 = scmp.ne.s32.totalorder %s47, %s49
    %p56 = scmp.eq.s32.totalorder %s18, 1
    %p57 = por %p55, %p56
    %p58 = scmp.ne.s32.totalorder %s49, %s50
    %p59 = scmp.eq.s32.totalorder %s18, 0
    %p60 = por %p58, %p59
    %p61 = scmp.ne.s32.totalorder %s49, %s50
    %p62 = scmp.eq.s32.totalorder %s19, 1
    %p63 = por %p61, %p62
    %p65 = scmp.ne.s32.totalorder %s50, %s64
    %p66 = scmp.eq.s32.totalorder %s19, 0
    %p67 = por %p65, %p66
    %s69 = sadd.s32 %s68, 1
    %p72 = scmp.eq.s32.totalorder %s13, 1
    %p73 = scmp.ne.s32.totalorder %s68, %s70
    %p74 = scmp.eq.s32.totalorder %s13, 0
    %p75 = por %p73, %p74
    %p76 = scmp.ne.s32.totalorder %s68, %s70
    %p77 = scmp.eq.s32.totalorder %s18, 1
    %p78 = por %p76, %p77
    %p79 = scmp.ne.s32.totalorder %s70, %s71
    %p80 = scmp.eq.s32.totalorder %s18, 0
    %p81 = por %p79, %p80
    %p82 = scmp.ne.s32.totalorder %s70, %s71
    %p83 = scmp.eq.s32.totalorder %s19, 1
    %p84 = por %p82, %p83
    %p86 = scmp.ne.s32.totalorder %s71, %s85
    %p87 = scmp.eq.s32.totalorder %s19, 0
    %p88 = por %p86, %p87
    %s90 = sadd.s32 %s89, 1
    %p93 = scmp.eq.s32.totalorder %s13, 1
    %p94 = scmp.ne.s32.totalorder %s89, %s91
    %p95 = scmp.eq.s32.totalorder %s13, 0
    %p96 = por %p94, %p95
    %p97 = scmp.ne.s32.totalorder %s89, %s91
    %p98 = scmp.eq.s32.totalorder %s18, 1
    %p99 = por %p97, %p98
    %p100 = scmp.ne.s32.totalorder %s91, %s92
    %p101 = scmp.eq.s32.totalorder %s18, 0
    %p102 = por %p100, %p101
    %p103 = scmp.ne.s32.totalorder %s91, %s92
    %p104 = scmp.eq.s32.totalorder %s19, 1
    %p105 = por %p103, %p104
    %p107 = scmp.ne.s32.totalorder %s92, %s106
    %p108 = scmp.eq.s32.totalorder %s19, 0
    %p109 = por %p107, %p108
    %s111 = sadd.s32 %s110, 1
    %p114 = scmp.eq.s32.totalorder %s13, 1
    %p115 = scmp.ne.s32.totalorder %s110, %s112
    %p116 = scmp.eq.s32.totalorder %s13, 0
    %p117 = por %p115, %p116
    %p118 = scmp.ne.s32.totalorder %s110, %s112
    %p119 = scmp.eq.s32.totalorder %s18, 1
    %p120 = por %p118, %p119
    %p121 = scmp.ne.s32.totalorder %s112, %s113
    %p122 = scmp.eq.s32.totalorder %s18, 0
    %p123 = por %p121, %p122
    %p124 = scmp.ne.s32.totalorder %s112, %s113
    %p125 = scmp.eq.s32.totalorder %s19, 1
    %p126 = por %p124, %p125
    %p128 = scmp.ne.s32.totalorder %s113, %s127
    %p129 = scmp.eq.s32.totalorder %s19, 0
    %p130 = por %p128, %p129
    %s132 = sadd.s32 %s131, 1
    %p135 = scmp.eq.s32.totalorder %s13, 1
    %p136 = scmp.ne.s32.totalorder %s131, %s133
    %p137 = scmp.eq.s32.totalorder %s13, 0
    %p138 = por %p136, %p137
    %p139 = scmp.ne.s32.totalorder %s131, %s133
    %p140 = scmp.eq.s32.totalorder %s18, 1
    %p141 = por %p139, %p140
    %p142 = scmp.ne.s32.totalorder %s133, %s134
    %p143 = scmp.eq.s32.totalorder %s18, 0
    %p144 = por %p142, %p143
    %p145 = scmp.ne.s32.totalorder %s133, %s134
    %p146 = scmp.eq.s32.totalorder %s19, 1
    %p147 = por %p145, %p146
    %p149 = scmp.ne.s32.totalorder %s134, %s148
    %p150 = scmp.eq.s32.totalorder %s19, 0
    %p151 = por %p149, %p150
    %s153 = sadd.s32 %s152, 1
    %p156 = scmp.eq.s32.totalorder %s13, 1
    %p157 = scmp.ne.s32.totalorder %s152, %s154
    %p158 = scmp.eq.s32.totalorder %s13, 0
    %p159 = por %p157, %p158
    %p160 = scmp.ne.s32.totalorder %s152, %s154
    %p161 = scmp.eq.s32.totalorder %s18, 1
    %p162 = por %p160, %p161
    %p163 = scmp.ne.s32.totalorder %s154, %s155
    %p164 = scmp.eq.s32.totalorder %s18, 0
    %p165 = por %p163, %p164
    %p166 = scmp.ne.s32.totalorder %s154, %s155
    %p167 = scmp.eq.s32.totalorder %s19, 1
    %p168 = por %p166, %p167
    %p170 = scmp.ne.s32.totalorder %s155, %s169
    %p171 = scmp.eq.s32.totalorder %s19, 0
    %p172 = por %p170, %p171
    %s173 = ssub.s32 %s13, %s20
    %p174 = scmp.eq.s32.totalorder %s173, 0
    %s176 = sadd.s32 %s175, 1
    %s177 = scalar_select %p174, %s175, %s176
    %p180 = pneg %p174
    %p181 = scmp.eq.s32.totalorder %s13, 1
    %p182 = por %p180, %p181
    %p183 = scmp.ne.s32.totalorder %s175, %s178
    %p184 = scmp.eq.s32.totalorder %s13, 0
    %p185 = por %p183, %p184
    %p186 = scmp.ne.s32.totalorder %s175, %s178
    %p187 = scmp.eq.s32.totalorder %s18, 1
    %p188 = por %p186, %p187
    %p189 = scmp.ne.s32.totalorder %s178, %s179
    %p190 = scmp.eq.s32.totalorder %s18, 0
    %p191 = por %p189, %p190
    %p192 = scmp.ne.s32.totalorder %s178, %s179
    %p193 = scmp.eq.s32.totalorder %s19, 1
    %p194 = por %p192, %p193
    %p196 = scmp.ne.s32.totalorder %s179, %s195
    %p197 = scmp.eq.s32.totalorder %s19, 0
    %p198 = por %p196, %p197
    %p199 = scmp.le.s32.totalorder 1, %s13
    %p200 = scmp.lt.s32.totalorder %s13, 3
    %p201 = pnand %p199, %p200
    %p202 = pneg %p201
    // Predicated region
    $region9: #{emotion_classifier_forward.1} parent=5 // pred_check
      _
    $region10: #{emotion_classifier_forward.1} parent=5 // pred_check_branch
      %204 = sbr.rel (%p201) target = $region12
    $region11: #{emotion_classifier_forward.1} parent=5 // pred_region
      %s205 = ssub.s32 %s13, 1
      // Predicated region
      $region13: #{emotion_classifier_forward.1} parent=11 // pred_check
        %p206 = pneg %p60
      $region14: #{emotion_classifier_forward.1} parent=11 // pred_check_branch
        %208 = sbr.rel (%p206) target = $region16
      $region15: #{emotion_classifier_forward.1} parent=11 // pred_region
        _
      $region16: #{emotion_classifier_forward.1} parent=11 // pred_fallthru
        _
      // Predicated region
      $region17: #{emotion_classifier_forward.1} parent=11 // pred_check
        %p209 = pneg %p81
      $region18: #{emotion_classifier_forward.1} parent=11 // pred_check_branch
        %211 = sbr.rel (%p209) target = $region20
      $region19: #{emotion_classifier_forward.1} parent=11 // pred_region
        _
      $region20: #{emotion_classifier_forward.1} parent=11 // pred_fallthru
        _
      // Predicated region
      $region21: #{emotion_classifier_forward.1} parent=11 // pred_check
        %p212 = pneg %p102
      $region22: #{emotion_classifier_forward.1} parent=11 // pred_check_branch
        %214 = sbr.rel (%p212) target = $region24
      $region23: #{emotion_classifier_forward.1} parent=11 // pred_region
        _
      $region24: #{emotion_classifier_forward.1} parent=11 // pred_fallthru
        _
      // Predicated region
      $region25: #{emotion_classifier_forward.1} parent=11 // pred_check
        %p215 = pneg %p123
      $region26: #{emotion_classifier_forward.1} parent=11 // pred_check_branch
        %217 = sbr.rel (%p215) target = $region28
      $region27: #{emotion_classifier_forward.1} parent=11 // pred_region
        _
      $region28: #{emotion_classifier_forward.1} parent=11 // pred_fallthru
        _
      // Predicated region
      $region29: #{emotion_classifier_forward.1} parent=11 // pred_check
        %p218 = pneg %p144
      $region30: #{emotion_classifier_forward.1} parent=11 // pred_check_branch
        %220 = sbr.rel (%p218) target = $region32
      $region31: #{emotion_classifier_forward.1} parent=11 // pred_region
        _
      $region32: #{emotion_classifier_forward.1} parent=11 // pred_fallthru
        _
      // Predicated region
      $region33: #{emotion_classifier_forward.1} parent=11 // pred_check
        %p221 = pneg %p165
      $region34: #{emotion_classifier_forward.1} parent=11 // pred_check_branch
        %223 = sbr.rel (%p221) target = $region36
      $region35: #{emotion_classifier_forward.1} parent=11 // pred_region
        _
      $region36: #{emotion_classifier_forward.1} parent=11 // pred_fallthru
        _
    $region12: #{emotion_classifier_forward.1} parent=5 // pred_fallthru
      _
    %p224 = scmp.lt.s32.totalorder %s13, 2
    // Predicated region
    $region37: #{emotion_classifier_forward.1} parent=5 // pred_check
      %p225 = pneg %p224
    $region38: #{emotion_classifier_forward.1} parent=5 // pred_check_branch
      %227 = sbr.rel (%p225) target = $region40
    $region39: #{emotion_classifier_forward.1} parent=5 // pred_region
      // Predicated region
      $region41: #{emotion_classifier_forward.1} parent=39 // pred_check
        %p228 = pneg %p33
      $region42: #{emotion_classifier_forward.1} parent=39 // pred_check_branch
        %230 = sbr.rel (%p228) target = $region44
      $region43: #{emotion_classifier_forward.1} parent=39 // pred_region
        %s231 = smul.u32 8, %s13
        %p232 = scmp.lt.s32.totalorder %s231, 15
        %s233 = scalar_select %p232, %s231, 15
        %s234 = smul.addr %s233, 6
        %s235 = smul.addr %s234, 8
        %s236 = scalar_lea.vmem %s0, %s235
        %s237 = smul.u32 8, %s13
      $region44: #{emotion_classifier_forward.1} parent=39 // pred_fallthru
        _
    $region40: #{emotion_classifier_forward.1} parent=5 // pred_fallthru
      _
    %p238 = scmp.le.s32.totalorder 1, %s13
    %p239 = scmp.lt.s32.totalorder %s13, 3
    %p240 = pnand %p238, %p239
    %p241 = pneg %p240
    // Predicated region
    $region45: #{emotion_classifier_forward.1} parent=5 // pred_check
      _
    $region46: #{emotion_classifier_forward.1} parent=5 // pred_check_branch
      %243 = sbr.rel (%p240) target = $region48
    $region47: #{emotion_classifier_forward.1} parent=5 // pred_region
      %s244 = ssub.s32 %s13, 1
      %s245 = smul.u32 8, %s18
      %p246 = scmp.lt.s32.totalorder %s245, 15
      %s247 = scalar_select %p246, %s245, 15
      %s248 = smul.addr %s247, 6
      %s249 = smul.addr %s248, 8
      %s250 = scalar_lea.vmem %s0, %s249
      %p251 = pneg %p39
      %p252 = pneg %p36
      %p253 = pneg %p60
      %p254 = pneg %p57
      %p255 = pneg %p81
      %p256 = pneg %p78
      %p257 = pneg %p102
      %p258 = pneg %p99
      %p259 = pneg %p123
      %p260 = pneg %p120
      %p261 = pneg %p144
      %p262 = pneg %p141
      %p263 = pneg %p165
      %p264 = pneg %p162
      %p265 = pneg %p191
      %p266 = pneg %p188
      %s267 = smul.u32 8, %s18
      %p268 = scmp.lt.s32.totalorder %s267, 15
      %s269 = scalar_select %p268, %s267, 15
      %s270 = smul.addr %s269, 8
      %s271 = scalar_lea.vmem %s7, %s270
      %s272 = smul.u32 8, %s18
      %p273 = scmp.lt.s32.totalorder %s272, 15
      %s274 = scalar_select %p273, %s272, 15
      %s275 = smul.addr %s274, 6
      %s276 = smul.addr %s275, 8
      %s277 = scalar_lea.vmem %s0, %s276
      %s278 = smul.u32 8, %s18
      %s279 = smul.u32 8, %s18
      %p280 = scmp.lt.s32.totalorder %s279, 15
      %s281 = scalar_select %p280, %s279, 15
      %s282 = smul.addr %s281, 8
      %s283 = scalar_lea.vmem %s7, %s282
      %s284 = smul.u32 8, %s18
      %v286 = vld [vmem:[%s277] sm:$0xff]
      %v287 = vld [vmem:[%s277 + $0x8] sm:$0xff]
      %v288 = vld [vmem:[%s277 + $0x10] sm:$0xff]
      %v289 = vld [vmem:[%s277 + $0x18] sm:$0xff]
      %v290 = vld [vmem:[%s277 + $0x20] sm:$0xff]
      %v291 = vld [vmem:[%s277 + $0x28] sm:$0xff]
      %v292 = vld [vmem:[%s277 + $0x30] sm:$0xff]
      %v293 = vld [vmem:[%s277 + $0x38] sm:$0xff]
      %v294 = vld [vmem:[%s277 + $0x40] sm:$0xff]
      %v295 = vld [vmem:[%s277 + $0x48] sm:$0xff]
      %v296 = vld [vmem:[%s277 + $0x50] sm:$0xff]
      %v297 = vld [vmem:[%s277 + $0x58] sm:$0xff]
      %v298 = vld [vmem:[%s277 + $0x60] sm:$0xff]
      %v299 = vld [vmem:[%s277 + $0x68] sm:$0xff]
      %v300 = vld [vmem:[%s277 + $0x70] sm:$0xff]
      %v301 = vld [vmem:[%s277 + $0x78] sm:$0xff]
      %v302 = vld [vmem:[%s277 + $0x80] sm:$0xff]
      %v303 = vld [vmem:[%s277 + $0x88] sm:$0xff]
      %v304 = vld [vmem:[%s277 + $0x90] sm:$0xff]
      %v305 = vld [vmem:[%s277 + $0x98] sm:$0xff]
      %v306 = vld [vmem:[%s277 + $0xa0] sm:$0xff]
      %v307 = vld [vmem:[%s277 + $0xa8] sm:$0xff]
      %v308 = vld [vmem:[%s277 + $0xb0] sm:$0xff]
      %v309 = vld [vmem:[%s277 + $0xb8] sm:$0xff]
      %v310 = vld [vmem:[%s277 + $0xc0] sm:$0xff]
      %v311 = vld [vmem:[%s277 + $0xc8] sm:$0xff]
      %v312 = vld [vmem:[%s277 + $0xd0] sm:$0xff]
      %v313 = vld [vmem:[%s277 + $0xd8] sm:$0xff]
      %v314 = vld [vmem:[%s277 + $0xe0] sm:$0xff]
      %v315 = vld [vmem:[%s277 + $0xe8] sm:$0xff]
      %v316 = vld [vmem:[%s277 + $0xf0] sm:$0xff]
      %v317 = vld [vmem:[%s277 + $0xf8] sm:$0xff]
      %v318 = vld [vmem:[%s277 + $0x100] sm:$0xff]
      %v319 = vld [vmem:[%s277 + $0x108] sm:$0xff]
      %v320 = vld [vmem:[%s277 + $0x110] sm:$0xff]
      %v321 = vld [vmem:[%s277 + $0x118] sm:$0xff]
      %v322 = vld [vmem:[%s277 + $0x120] sm:$0xff]
      %v323 = vld [vmem:[%s277 + $0x128] sm:$0xff]
      %v324 = vld [vmem:[%s277 + $0x130] sm:$0xff]
      %v325 = vld [vmem:[%s277 + $0x138] sm:$0xff]
      %v326 = vld [vmem:[%s277 + $0x140] sm:$0xff]
      %v327 = vld [vmem:[%s277 + $0x148] sm:$0xff]
      %v328 = vld [vmem:[%s277 + $0x150] sm:$0xff]
      %v329 = vld [vmem:[%s277 + $0x158] sm:$0xff]
      %v330 = vld [vmem:[%s277 + $0x160] sm:$0xff]
      %v331 = vld [vmem:[%s277 + $0x168] sm:$0xff]
      %v332 = vld [vmem:[%s277 + $0x170] sm:$0xff]
      %v333 = vld [vmem:[%s277 + $0x178] sm:$0xff]
      %v334 = vpack.c.bf16 %v292, %v286
      %v335 = vpack.c.bf16 %v293, %v287
      %v336 = vpack.c.bf16 %v294, %v288
      %v337 = vpack.c.bf16 %v295, %v289
      %v338 = vpack.c.bf16 %v296, %v290
      %v339 = vpack.c.bf16 %v297, %v291
      %v340 = vpack.c.bf16 %v304, %v298
      %v341 = vpack.c.bf16 %v305, %v299
      %v342 = vpack.c.bf16 %v306, %v300
      %v343 = vpack.c.bf16 %v307, %v301
      %v344 = vpack.c.bf16 %v308, %v302
      %v345 = vpack.c.bf16 %v309, %v303
      %v346 = vpack.c.bf16 %v316, %v310
      %v347 = vpack.c.bf16 %v317, %v311
      %v348 = vpack.c.bf16 %v318, %v312
      %v349 = vpack.c.bf16 %v319, %v313
      %v350 = vpack.c.bf16 %v320, %v314
      %v351 = vpack.c.bf16 %v321, %v315
      %v352 = vpack.c.bf16 %v328, %v322
      %v353 = vpack.c.bf16 %v329, %v323
      %v354 = vpack.c.bf16 %v330, %v324
      %v355 = vpack.c.bf16 %v331, %v325
      %v356 = vpack.c.bf16 %v332, %v326
      %v357 = vpack.c.bf16 %v333, %v327
      %v358 = vld [vmem:[%s1] sm:$0xff]
      %v359 = vld [vmem:[%s1 + $0x8] sm:$0xff]
      %v360 = vld [vmem:[%s1 + $0x10] sm:$0xff]
      %v361 = vld [vmem:[%s1 + $0x18] sm:$0xff]
      %v362 = vld [vmem:[%s1 + $0x20] sm:$0xff]
      %v363 = vld [vmem:[%s1 + $0x28] sm:$0xff]
      %v364 = vld [vmem:[%s1 + $0x30] sm:$0xff]
      %v365 = vld [vmem:[%s1 + $0x38] sm:$0xff]
      %v366 = vld [vmem:[%s1 + $0x40] sm:$0xff]
      %v367 = vld [vmem:[%s1 + $0x48] sm:$0xff]
      %v368 = vld [vmem:[%s1 + $0x50] sm:$0xff]
      %v369 = vld [vmem:[%s1 + $0x58] sm:$0xff]
      %v370 = vld [vmem:[%s1 + $0x60] sm:$0xff]
      %v371 = vld [vmem:[%s1 + $0x68] sm:$0xff]
      %v372 = vld [vmem:[%s1 + $0x70] sm:$0xff]
      %v373 = vld [vmem:[%s1 + $0x78] sm:$0xff]
      %v374 = vld [vmem:[%s1 + $0x80] sm:$0xff]
      %v375 = vld [vmem:[%s1 + $0x88] sm:$0xff]
      %v376 = vld [vmem:[%s1 + $0x90] sm:$0xff]
      %v377 = vld [vmem:[%s1 + $0x98] sm:$0xff]
      %v378 = vld [vmem:[%s1 + $0xa0] sm:$0xff]
      %v379 = vld [vmem:[%s1 + $0xa8] sm:$0xff]
      %v380 = vld [vmem:[%s1 + $0xb0] sm:$0xff]
      %v381 = vld [vmem:[%s1 + $0xb8] sm:$0xff]
      %v382 = vld [vmem:[%s1 + $0xc0] sm:$0xff]
      %v383 = vld [vmem:[%s1 + $0xc8] sm:$0xff]
      %v384 = vld [vmem:[%s1 + $0xd0] sm:$0xff]
      %v385 = vld [vmem:[%s1 + $0xd8] sm:$0xff]
      %v386 = vld [vmem:[%s1 + $0xe0] sm:$0xff]
      %v387 = vld [vmem:[%s1 + $0xe8] sm:$0xff]
      %v388 = vld [vmem:[%s1 + $0xf0] sm:$0xff]
      %v389 = vld [vmem:[%s1 + $0xf8] sm:$0xff]
      %v390 = vld [vmem:[%s1 + $0x100] sm:$0xff]
      %v391 = vld [vmem:[%s1 + $0x108] sm:$0xff]
      %v392 = vld [vmem:[%s1 + $0x110] sm:$0xff]
      %v393 = vld [vmem:[%s1 + $0x118] sm:$0xff]
      %v394 = vld [vmem:[%s1 + $0x120] sm:$0xff]
      %v395 = vld [vmem:[%s1 + $0x128] sm:$0xff]
      %v396 = vld [vmem:[%s1 + $0x130] sm:$0xff]
      %v397 = vld [vmem:[%s1 + $0x138] sm:$0xff]
      %v398 = vld [vmem:[%s1 + $0x140] sm:$0xff]
      %v399 = vld [vmem:[%s1 + $0x148] sm:$0xff]
      %v400 = vld [vmem:[%s1 + $0x150] sm:$0xff]
      %v401 = vld [vmem:[%s1 + $0x158] sm:$0xff]
      %v402 = vld [vmem:[%s1 + $0x160] sm:$0xff]
      %v403 = vld [vmem:[%s1 + $0x168] sm:$0xff]
      %v404 = vld [vmem:[%s1 + $0x170] sm:$0xff]
      %v405 = vld [vmem:[%s1 + $0x178] sm:$0xff]
      %v406 = vld [vmem:[%s1 + $0x180] sm:$0xff]
      %v407 = vld [vmem:[%s1 + $0x188] sm:$0xff]
      %v408 = vld [vmem:[%s1 + $0x190] sm:$0xff]
      %v409 = vld [vmem:[%s1 + $0x198] sm:$0xff]
      %v410 = vld [vmem:[%s1 + $0x1a0] sm:$0xff]
      %v411 = vld [vmem:[%s1 + $0x1a8] sm:$0xff]
      %v412 = vld [vmem:[%s1 + $0x1b0] sm:$0xff]
      %v413 = vld [vmem:[%s1 + $0x1b8] sm:$0xff]
      %v414 = vld [vmem:[%s1 + $0x1c0] sm:$0xff]
      %v415 = vld [vmem:[%s1 + $0x1c8] sm:$0xff]
      %v416 = vld [vmem:[%s1 + $0x1d0] sm:$0xff]
      %v417 = vld [vmem:[%s1 + $0x1d8] sm:$0xff]
      %v418 = vld [vmem:[%s1 + $0x1e0] sm:$0xff]
      %v419 = vld [vmem:[%s1 + $0x1e8] sm:$0xff]
      %v420 = vld [vmem:[%s1 + $0x1f0] sm:$0xff]
      %v421 = vld [vmem:[%s1 + $0x1f8] sm:$0xff]
      %v422 = vld [vmem:[%s1 + $0x200] sm:$0xff]
      %v423 = vld [vmem:[%s1 + $0x208] sm:$0xff]
      %v424 = vld [vmem:[%s1 + $0x210] sm:$0xff]
      %v425 = vld [vmem:[%s1 + $0x218] sm:$0xff]
      %v426 = vld [vmem:[%s1 + $0x220] sm:$0xff]
      %v427 = vld [vmem:[%s1 + $0x228] sm:$0xff]
      %v428 = vld [vmem:[%s1 + $0x230] sm:$0xff]
      %v429 = vld [vmem:[%s1 + $0x238] sm:$0xff]
      %v430 = vld [vmem:[%s1 + $0x240] sm:$0xff]
      %v431 = vld [vmem:[%s1 + $0x248] sm:$0xff]
      %v432 = vld [vmem:[%s1 + $0x250] sm:$0xff]
      %v433 = vld [vmem:[%s1 + $0x258] sm:$0xff]
      %v434 = vld [vmem:[%s1 + $0x260] sm:$0xff]
      %v435 = vld [vmem:[%s1 + $0x268] sm:$0xff]
      %v436 = vld [vmem:[%s1 + $0x270] sm:$0xff]
      %v437 = vld [vmem:[%s1 + $0x278] sm:$0xff]
      %v438 = vld [vmem:[%s1 + $0x280] sm:$0xff]
      %v439 = vld [vmem:[%s1 + $0x288] sm:$0xff]
      %v440 = vld [vmem:[%s1 + $0x290] sm:$0xff]
      %v441 = vld [vmem:[%s1 + $0x298] sm:$0xff]
      %v442 = vld [vmem:[%s1 + $0x2a0] sm:$0xff]
      %v443 = vld [vmem:[%s1 + $0x2a8] sm:$0xff]
      %v444 = vld [vmem:[%s1 + $0x2b0] sm:$0xff]
      %v445 = vld [vmem:[%s1 + $0x2b8] sm:$0xff]
      %v446 = vld [vmem:[%s1 + $0x2c0] sm:$0xff]
      %v447 = vld [vmem:[%s1 + $0x2c8] sm:$0xff]
      %v448 = vld [vmem:[%s1 + $0x2d0] sm:$0xff]
      %v449 = vld [vmem:[%s1 + $0x2d8] sm:$0xff]
      %v450 = vld [vmem:[%s1 + $0x2e0] sm:$0xff]
      %v451 = vld [vmem:[%s1 + $0x2e8] sm:$0xff]
      %v452 = vld [vmem:[%s1 + $0x2f0] sm:$0xff]
      %v453 = vld [vmem:[%s1 + $0x2f8] sm:$0xff]
      %v454 = vld [vmem:[%s2] sm:$0x3]
      %v456 = vlaneseq
      %v457 = vshrl.u32 %v456, 7
      %v458 = vsub.s32 0, %v457
      %v459 = vrot.slane %v454, %v458
      %v460 = vlaneseq
      %v461 = vshrl.u32 %v460, 7
      %v462 = vsub.s32 1, %v461
      %v463 = vrot.slane %v454, %v462
      %v562 = vunpack.c.l.b16 %v358
      %v563 = vunpack.c.h.b16 %v358
      %v564 = vunpack.c.l.b16 %v359
      %v565 = vunpack.c.h.b16 %v359
      %v566 = vunpack.c.l.b16 %v360
      %v567 = vunpack.c.h.b16 %v360
      %v568 = vunpack.c.l.b16 %v361
      %v569 = vunpack.c.h.b16 %v361
      %v570 = vunpack.c.l.b16 %v362
      %v571 = vunpack.c.h.b16 %v362
      %v572 = vunpack.c.l.b16 %v363
      %v573 = vunpack.c.h.b16 %v363
      %v574 = vunpack.c.l.b16 %v364
      %v575 = vunpack.c.h.b16 %v364
      %v576 = vunpack.c.l.b16 %v365
      %v577 = vunpack.c.h.b16 %v365
      %v578 = vunpack.c.l.b16 %v366
      %v579 = vunpack.c.h.b16 %v366
      %v580 = vunpack.c.l.b16 %v367
      %v581 = vunpack.c.h.b16 %v367
      %v582 = vunpack.c.l.b16 %v368
      %v583 = vunpack.c.h.b16 %v368
      %v584 = vunpack.c.l.b16 %v369
      %v585 = vunpack.c.h.b16 %v369
      %v586 = vunpack.c.l.b16 %v370
      %v587 = vunpack.c.h.b16 %v370
      %v588 = vunpack.c.l.b16 %v371
      %v589 = vunpack.c.h.b16 %v371
      %v590 = vunpack.c.l.b16 %v372
      %v591 = vunpack.c.h.b16 %v372
      %v592 = vunpack.c.l.b16 %v373
      %v593 = vunpack.c.h.b16 %v373
      %v594 = vunpack.c.l.b16 %v374
      %v595 = vunpack.c.h.b16 %v374
      %v596 = vunpack.c.l.b16 %v375
      %v597 = vunpack.c.h.b16 %v375
      %v598 = vunpack.c.l.b16 %v376
      %v599 = vunpack.c.h.b16 %v376
      %v600 = vunpack.c.l.b16 %v377
      %v601 = vunpack.c.h.b16 %v377
      %v602 = vunpack.c.l.b16 %v378
      %v603 = vunpack.c.h.b16 %v378
      %v604 = vunpack.c.l.b16 %v379
      %v605 = vunpack.c.h.b16 %v379
      %v606 = vunpack.c.l.b16 %v380
      %v607 = vunpack.c.h.b16 %v380
      %v608 = vunpack.c.l.b16 %v381
      %v609 = vunpack.c.h.b16 %v381
      %v610 = vunpack.c.l.b16 %v382
      %v611 = vunpack.c.h.b16 %v382
      %v612 = vunpack.c.l.b16 %v383
      %v613 = vunpack.c.h.b16 %v383
      %v614 = vunpack.c.l.b16 %v384
      %v615 = vunpack.c.h.b16 %v384
      %v616 = vunpack.c.l.b16 %v385
      %v617 = vunpack.c.h.b16 %v385
      %v618 = vunpack.c.l.b16 %v386
      %v619 = vunpack.c.h.b16 %v386
      %v620 = vunpack.c.l.b16 %v387
      %v621 = vunpack.c.h.b16 %v387
      %v622 = vunpack.c.l.b16 %v388
      %v623 = vunpack.c.h.b16 %v388
      %v624 = vunpack.c.l.b16 %v389
      %v625 = vunpack.c.h.b16 %v389
      %v626 = vunpack.c.l.b16 %v390
      %v627 = vunpack.c.h.b16 %v390
      %v628 = vunpack.c.l.b16 %v391
      %v629 = vunpack.c.h.b16 %v391
      %v630 = vunpack.c.l.b16 %v392
      %v631 = vunpack.c.h.b16 %v392
      %v632 = vunpack.c.l.b16 %v393
      %v633 = vunpack.c.h.b16 %v393
      %v634 = vunpack.c.l.b16 %v394
      %v635 = vunpack.c.h.b16 %v394
      %v636 = vunpack.c.l.b16 %v395
      %v637 = vunpack.c.h.b16 %v395
      %v638 = vunpack.c.l.b16 %v396
      %v639 = vunpack.c.h.b16 %v396
      %v640 = vunpack.c.l.b16 %v397
      %v641 = vunpack.c.h.b16 %v397
      %v642 = vunpack.c.l.b16 %v398
      %v643 = vunpack.c.h.b16 %v398
      %v644 = vunpack.c.l.b16 %v399
      %v645 = vunpack.c.h.b16 %v399
      %v646 = vunpack.c.l.b16 %v400
      %v647 = vunpack.c.h.b16 %v400
      %v648 = vunpack.c.l.b16 %v401
      %v649 = vunpack.c.h.b16 %v401
      %v650 = vunpack.c.l.b16 %v402
      %v651 = vunpack.c.h.b16 %v402
      %v652 = vunpack.c.l.b16 %v403
      %v653 = vunpack.c.h.b16 %v403
      %v654 = vunpack.c.l.b16 %v404
      %v655 = vunpack.c.h.b16 %v404
      %v656 = vunpack.c.l.b16 %v405
      %v657 = vunpack.c.h.b16 %v405
      %v658 = vunpack.c.l.b16 %v406
      %v659 = vunpack.c.h.b16 %v406
      %v660 = vunpack.c.l.b16 %v407
      %v661 = vunpack.c.h.b16 %v407
      %v662 = vunpack.c.l.b16 %v408
      %v663 = vunpack.c.h.b16 %v408
      %v664 = vunpack.c.l.b16 %v409
      %v665 = vunpack.c.h.b16 %v409
      %v666 = vunpack.c.l.b16 %v410
      %v667 = vunpack.c.h.b16 %v410
      %v668 = vunpack.c.l.b16 %v411
      %v669 = vunpack.c.h.b16 %v411
      %v670 = vunpack.c.l.b16 %v412
      %v671 = vunpack.c.h.b16 %v412
      %v672 = vunpack.c.l.b16 %v413
      %v673 = vunpack.c.h.b16 %v413
      %v674 = vunpack.c.l.b16 %v414
      %v675 = vunpack.c.h.b16 %v414
      %v676 = vunpack.c.l.b16 %v415
      %v677 = vunpack.c.h.b16 %v415
      %v678 = vunpack.c.l.b16 %v416
      %v679 = vunpack.c.h.b16 %v416
      %v680 = vunpack.c.l.b16 %v417
      %v681 = vunpack.c.h.b16 %v417
      %v682 = vunpack.c.l.b16 %v418
      %v683 = vunpack.c.h.b16 %v418
      %v684 = vunpack.c.l.b16 %v419
      %v685 = vunpack.c.h.b16 %v419
      %v686 = vunpack.c.l.b16 %v420
      %v687 = vunpack.c.h.b16 %v420
      %v688 = vunpack.c.l.b16 %v421
      %v689 = vunpack.c.h.b16 %v421
      %v690 = vunpack.c.l.b16 %v422
      %v691 = vunpack.c.h.b16 %v422
      %v692 = vunpack.c.l.b16 %v423
      %v693 = vunpack.c.h.b16 %v423
      %v694 = vunpack.c.l.b16 %v424
      %v695 = vunpack.c.h.b16 %v424
      %v696 = vunpack.c.l.b16 %v425
      %v697 = vunpack.c.h.b16 %v425
      %v698 = vunpack.c.l.b16 %v426
      %v699 = vunpack.c.h.b16 %v426
      %v700 = vunpack.c.l.b16 %v427
      %v701 = vunpack.c.h.b16 %v427
      %v702 = vunpack.c.l.b16 %v428
      %v703 = vunpack.c.h.b16 %v428
      %v704 = vunpack.c.l.b16 %v429
      %v705 = vunpack.c.h.b16 %v429
      %v706 = vunpack.c.l.b16 %v430
      %v707 = vunpack.c.h.b16 %v430
      %v708 = vunpack.c.l.b16 %v431
      %v709 = vunpack.c.h.b16 %v431
      %v710 = vunpack.c.l.b16 %v432
      %v711 = vunpack.c.h.b16 %v432
      %v712 = vunpack.c.l.b16 %v433
      %v713 = vunpack.c.h.b16 %v433
      %v714 = vunpack.c.l.b16 %v434
      %v715 = vunpack.c.h.b16 %v434
      %v716 = vunpack.c.l.b16 %v435
      %v717 = vunpack.c.h.b16 %v435
      %v718 = vunpack.c.l.b16 %v436
      %v719 = vunpack.c.h.b16 %v436
      %v720 = vunpack.c.l.b16 %v437
      %v721 = vunpack.c.h.b16 %v437
      %v722 = vunpack.c.l.b16 %v438
      %v723 = vunpack.c.h.b16 %v438
      %v724 = vunpack.c.l.b16 %v439
      %v725 = vunpack.c.h.b16 %v439
      %v726 = vunpack.c.l.b16 %v440
      %v727 = vunpack.c.h.b16 %v440
      %v728 = vunpack.c.l.b16 %v441
      %v729 = vunpack.c.h.b16 %v441
      %v730 = vunpack.c.l.b16 %v442
      %v731 = vunpack.c.h.b16 %v442
      %v732 = vunpack.c.l.b16 %v443
      %v733 = vunpack.c.h.b16 %v443
      %v734 = vunpack.c.l.b16 %v444
      %v735 = vunpack.c.h.b16 %v444
      %v736 = vunpack.c.l.b16 %v445
      %v737 = vunpack.c.h.b16 %v445
      %v738 = vunpack.c.l.b16 %v446
      %v739 = vunpack.c.h.b16 %v446
      %v740 = vunpack.c.l.b16 %v447
      %v741 = vunpack.c.h.b16 %v447
      %v742 = vunpack.c.l.b16 %v448
      %v743 = vunpack.c.h.b16 %v448
      %v744 = vunpack.c.l.b16 %v449
      %v745 = vunpack.c.h.b16 %v449
      %v746 = vunpack.c.l.b16 %v450
      %v747 = vunpack.c.h.b16 %v450
      %v748 = vunpack.c.l.b16 %v451
      %v749 = vunpack.c.h.b16 %v451
      %v750 = vunpack.c.l.b16 %v452
      %v751 = vunpack.c.h.b16 %v452
      %v752 = vunpack.c.l.b16 %v453
      %v753 = vunpack.c.h.b16 %v453
      %v754 = vpack.c.b16 %v564, %v562
      %v755 = vpack.c.b16 %v565, %v563
      %v756 = vpack.c.b16 %v568, %v566
      %v757 = vpack.c.b16 %v569, %v567
      %v758 = vpack.c.b16 %v572, %v570
      %v759 = vpack.c.b16 %v573, %v571
      %v760 = vpack.c.b16 %v576, %v574
      %v761 = vpack.c.b16 %v577, %v575
      %v762 = vpack.c.b16 %v580, %v578
      %v763 = vpack.c.b16 %v581, %v579
      %v764 = vpack.c.b16 %v584, %v582
      %v765 = vpack.c.b16 %v585, %v583
      %v766 = vpack.c.b16 %v588, %v586
      %v767 = vpack.c.b16 %v589, %v587
      %v768 = vpack.c.b16 %v592, %v590
      %v769 = vpack.c.b16 %v593, %v591
      %v770 = vpack.c.b16 %v596, %v594
      %v771 = vpack.c.b16 %v597, %v595
      %v772 = vpack.c.b16 %v600, %v598
      %v773 = vpack.c.b16 %v601, %v599
      %v774 = vpack.c.b16 %v604, %v602
      %v775 = vpack.c.b16 %v605, %v603
      %v776 = vpack.c.b16 %v608, %v606
      %v777 = vpack.c.b16 %v609, %v607
      %v778 = vpack.c.b16 %v612, %v610
      %v779 = vpack.c.b16 %v613, %v611
      %v780 = vpack.c.b16 %v616, %v614
      %v781 = vpack.c.b16 %v617, %v615
      %v782 = vpack.c.b16 %v620, %v618
      %v783 = vpack.c.b16 %v621, %v619
      %v784 = vpack.c.b16 %v624, %v622
      %v785 = vpack.c.b16 %v625, %v623
      %v786 = vpack.c.b16 %v628, %v626
      %v787 = vpack.c.b16 %v629, %v627
      %v788 = vpack.c.b16 %v632, %v630
      %v789 = vpack.c.b16 %v633, %v631
      %v790 = vpack.c.b16 %v636, %v634
      %v791 = vpack.c.b16 %v637, %v635
      %v792 = vpack.c.b16 %v640, %v638
      %v793 = vpack.c.b16 %v641, %v639
      %v794 = vpack.c.b16 %v644, %v642
      %v795 = vpack.c.b16 %v645, %v643
      %v796 = vpack.c.b16 %v648, %v646
      %v797 = vpack.c.b16 %v649, %v647
      %v798 = vpack.c.b16 %v652, %v650
      %v799 = vpack.c.b16 %v653, %v651
      %v800 = vpack.c.b16 %v656, %v654
      %v801 = vpack.c.b16 %v657, %v655
      %v802 = vpack.c.b16 %v660, %v658
      %v803 = vpack.c.b16 %v661, %v659
      %v804 = vpack.c.b16 %v664, %v662
      %v805 = vpack.c.b16 %v665, %v663
      %v806 = vpack.c.b16 %v668, %v666
      %v807 = vpack.c.b16 %v669, %v667
      %v808 = vpack.c.b16 %v672, %v670
      %v809 = vpack.c.b16 %v673, %v671
      %v810 = vpack.c.b16 %v676, %v674
      %v811 = vpack.c.b16 %v677, %v675
      %v812 = vpack.c.b16 %v680, %v678
      %v813 = vpack.c.b16 %v681, %v679
      %v814 = vpack.c.b16 %v684, %v682
      %v815 = vpack.c.b16 %v685, %v683
      %v816 = vpack.c.b16 %v688, %v686
      %v817 = vpack.c.b16 %v689, %v687
      %v818 = vpack.c.b16 %v692, %v690
      %v819 = vpack.c.b16 %v693, %v691
      %v820 = vpack.c.b16 %v696, %v694
      %v821 = vpack.c.b16 %v697, %v695
      %v822 = vpack.c.b16 %v700, %v698
      %v823 = vpack.c.b16 %v701, %v699
      %v824 = vpack.c.b16 %v704, %v702
      %v825 = vpack.c.b16 %v705, %v703
      %v826 = vpack.c.b16 %v708, %v706
      %v827 = vpack.c.b16 %v709, %v707
      %v828 = vpack.c.b16 %v712, %v710
      %v829 = vpack.c.b16 %v713, %v711
      %v830 = vpack.c.b16 %v716, %v714
      %v831 = vpack.c.b16 %v717, %v715
      %v832 = vpack.c.b16 %v720, %v718
      %v833 = vpack.c.b16 %v721, %v719
      %v834 = vpack.c.b16 %v724, %v722
      %v835 = vpack.c.b16 %v725, %v723
      %v836 = vpack.c.b16 %v728, %v726
      %v837 = vpack.c.b16 %v729, %v727
      %v838 = vpack.c.b16 %v732, %v730
      %v839 = vpack.c.b16 %v733, %v731
      %v840 = vpack.c.b16 %v736, %v734
      %v841 = vpack.c.b16 %v737, %v735
      %v842 = vpack.c.b16 %v740, %v738
      %v843 = vpack.c.b16 %v741, %v739
      %v844 = vpack.c.b16 %v744, %v742
      %v845 = vpack.c.b16 %v745, %v743
      %v846 = vpack.c.b16 %v748, %v746
      %v847 = vpack.c.b16 %v749, %v747
      %v848 = vpack.c.b16 %v752, %v750
      %v849 = vpack.c.b16 %v753, %v751
      %946 = vmatprep.subr.bf16.mxu0 %v755
      %947 = vmatpush1.bf16.msra.mxu0 %v754
      %948 = vmatprep.subr.bf16.mxu0 %v757
      %949 = vmatpush1.bf16.msra.mxu0 %v756
      %950 = vmatprep.subr.bf16.mxu0 %v759
      %951 = vmatpush1.bf16.msra.mxu0 %v758
      %952 = vmatprep.subr.bf16.mxu0 %v761
      %953 = vmatpush1.bf16.msra.mxu0 %v760
      %954 = vmatprep.subr.bf16.mxu0 %v763
      %955 = vmatpush1.bf16.msra.mxu0 %v762
      %956 = vmatprep.subr.bf16.mxu0 %v765
      %957 = vmatpush1.bf16.msra.mxu0 %v764
      %958 = vmatprep.subr.bf16.mxu0 %v767
      %959 = vmatpush1.bf16.msra.mxu0 %v766
      %960 = vmatprep.subr.bf16.mxu0 %v769
      %961 = vmatpush1.bf16.msra.mxu0 %v768
      %962 = vmatprep.subr.bf16.mxu0 %v771
      %963 = vmatpush1.bf16.msra.mxu0 %v770
      %964 = vmatprep.subr.bf16.mxu0 %v773
      %965 = vmatpush1.bf16.msra.mxu0 %v772
      %966 = vmatprep.subr.bf16.mxu0 %v775
      %967 = vmatpush1.bf16.msra.mxu0 %v774
      %968 = vmatprep.subr.bf16.mxu0 %v777
      %969 = vmatpush1.bf16.msra.mxu0 %v776
      %970 = vmatprep.subr.bf16.mxu0 %v779
      %971 = vmatpush1.bf16.msra.mxu0 %v778
      %972 = vmatprep.subr.bf16.mxu0 %v781
      %973 = vmatpush1.bf16.msra.mxu0 %v780
      %974 = vmatprep.subr.bf16.mxu0 %v783
      %975 = vmatpush1.bf16.msra.mxu0 %v782
      %976 = vmatprep.subr.bf16.mxu0 %v785
      %977 = vmatpush1.bf16.msra.mxu0 %v784
      %978 = vmatprep.mubr.bf16.mxu0 %v335
      %979 = vmatmul.mubr.bf16.gmra.mrb[0].mxu0 %v334
      %v980 = vpop.f32.mrb[0].mxu0
      %v981 = vadd.f32 %v459, %v980
      %v982 = vpop.f32.mrb[0].mxu0
      %v983 = vadd.f32 %v463, %v982
      %v984 = vpop.f32.mrb[0].mxu0
      %v985 = vadd.f32 %v459, %v984
      %v986 = vpop.f32.mrb[0].mxu0
      %v987 = vadd.f32 %v463, %v986
      %988 = vmatprep.mubr.bf16.mxu0 %v341
      %989 = vmatmul.mubr.bf16.gmra.mrb[0].mxu0 %v340
      %v990 = vpop.f32.mrb[0].mxu0
      %v991 = vadd.f32 %v459, %v990
      %v992 = vpop.f32.mrb[0].mxu0
      %v993 = vadd.f32 %v463, %v992
      %v994 = vpop.f32.mrb[0].mxu0
      %v995 = vadd.f32 %v459, %v994
      %v996 = vpop.f32.mrb[0].mxu0
      %v997 = vadd.f32 %v463, %v996
      %998 = vmatprep.mubr.bf16.mxu0 %v347
      %999 = vmatmul.mubr.bf16.gmra.mrb[0].mxu0 %v346
      %v1000 = vpop.f32.mrb[0].mxu0
      %v1001 = vadd.f32 %v459, %v1000
      %v1002 = vpop.f32.mrb[0].mxu0
      %v1003 = vadd.f32 %v463, %v1002
      %v1004 = vpop.f32.mrb[0].mxu0
      %v1005 = vadd.f32 %v459, %v1004
      %v1006 = vpop.f32.mrb[0].mxu0
      %v1007 = vadd.f32 %v463, %v1006
      %1008 = vmatprep.mubr.bf16.mxu0 %v353
      %1009 = vmatmul.mubr.bf16.gmra.mrb[0].mxu0 %v352
      %v1010 = vpop.f32.mrb[0].mxu0
      %v1011 = vadd.f32 %v459, %v1010
      %v1012 = vpop.f32.mrb[0].mxu0
      %v1013 = vadd.f32 %v463, %v1012
      %v1014 = vpop.f32.mrb[0].mxu0
      %v1015 = vadd.f32 %v459, %v1014
      %v1016 = vpop.f32.mrb[0].mxu0
      %v1017 = vadd.f32 %v463, %v1016
      %1018 = vdwg.mxu0
      %1019 = vmatprep.subr.bf16.mxu0 %v787
      %1020 = vmatpush1.bf16.msra.mxu0 %v786
      %1021 = vmatprep.subr.bf16.mxu0 %v789
      %1022 = vmatpush1.bf16.msra.mxu0 %v788
      %1023 = vmatprep.subr.bf16.mxu0 %v791
      %1024 = vmatpush1.bf16.msra.mxu0 %v790
      %1025 = vmatprep.subr.bf16.mxu0 %v793
      %1026 = vmatpush1.bf16.msra.mxu0 %v792
      %1027 = vmatprep.subr.bf16.mxu0 %v795
      %1028 = vmatpush1.bf16.msra.mxu0 %v794
      %1029 = vmatprep.subr.bf16.mxu0 %v797
      %1030 = vmatpush1.bf16.msra.mxu0 %v796
      %1031 = vmatprep.subr.bf16.mxu0 %v799
      %1032 = vmatpush1.bf16.msra.mxu0 %v798
      %1033 = vmatprep.subr.bf16.mxu0 %v801
      %1034 = vmatpush1.bf16.msra.mxu0 %v800
      %1035 = vmatprep.subr.bf16.mxu0 %v803
      %1036 = vmatpush1.bf16.msra.mxu0 %v802
      %1037 = vmatprep.subr.bf16.mxu0 %v805
      %1038 = vmatpush1.bf16.msra.mxu0 %v804
      %1039 = vmatprep.subr.bf16.mxu0 %v807
      %1040 = vmatpush1.bf16.msra.mxu0 %v806
      %1041 = vmatprep.subr.bf16.mxu0 %v809
      %1042 = vmatpush1.bf16.msra.mxu0 %v808
      %1043 = vmatprep.subr.bf16.mxu0 %v811
      %1044 = vmatpush1.bf16.msra.mxu0 %v810
      %1045 = vmatprep.subr.bf16.mxu0 %v813
      %1046 = vmatpush1.bf16.msra.mxu0 %v812
      %1047 = vmatprep.subr.bf16.mxu0 %v815
      %1048 = vmatpush1.bf16.msra.mxu0 %v814
      %1049 = vmatprep.subr.bf16.mxu0 %v817
      %1050 = vmatpush1.bf16.msra.mxu0 %v816
      %1051 = vmatprep.mubr.bf16.mxu0 %v337
      %1052 = vmatmul.mubr.bf16.gmra.mrb[0].mxu0 %v336
      %v1053 = vpop.f32.mrb[0].mxu0
      %v1054 = vadd.f32 %v981, %v1053
      %v1055 = vpop.f32.mrb[0].mxu0
      %v1056 = vadd.f32 %v983, %v1055
      %v1057 = vpop.f32.mrb[0].mxu0
      %v1058 = vadd.f32 %v985, %v1057
      %v1059 = vpop.f32.mrb[0].mxu0
      %v1060 = vadd.f32 %v987, %v1059
      %1061 = vmatprep.mubr.bf16.mxu0 %v343
      %1062 = vmatmul.mubr.bf16.gmra.mrb[0].mxu0 %v342
      %v1063 = vpop.f32.mrb[0].mxu0
      %v1064 = vadd.f32 %v991, %v1063
      %v1065 = vpop.f32.mrb[0].mxu0
      %v1066 = vadd.f32 %v993, %v1065
      %v1067 = vpop.f32.mrb[0].mxu0
      %v1068 = vadd.f32 %v995, %v1067
      %v1069 = vpop.f32.mrb[0].mxu0
      %v1070 = vadd.f32 %v997, %v1069
      %1071 = vmatprep.mubr.bf16.mxu0 %v349
      %1072 = vmatmul.mubr.bf16.gmra.mrb[0].mxu0 %v348
      %v1073 = vpop.f32.mrb[0].mxu0
      %v1074 = vadd.f32 %v1001, %v1073
      %v1075 = vpop.f32.mrb[0].mxu0
      %v1076 = vadd.f32 %v1003, %v1075
      %v1077 = vpop.f32.mrb[0].mxu0
      %v1078 = vadd.f32 %v1005, %v1077
      %v1079 = vpop.f32.mrb[0].mxu0
      %v1080 = vadd.f32 %v1007, %v1079
      %1081 = vmatprep.mubr.bf16.mxu0 %v355
      %1082 = vmatmul.mubr.bf16.gmra.mrb[0].mxu0 %v354
      %v1083 = vpop.f32.mrb[0].mxu0
      %v1084 = vadd.f32 %v1011, %v1083
      %v1085 = vpop.f32.mrb[0].mxu0
      %v1086 = vadd.f32 %v1013, %v1085
      %v1087 = vpop.f32.mrb[0].mxu0
      %v1088 = vadd.f32 %v1015, %v1087
      %v1089 = vpop.f32.mrb[0].mxu0
      %v1090 = vadd.f32 %v1017, %v1089
      %1091 = vdwg.mxu0
      %1092 = vmatprep.subr.bf16.mxu0 %v819
      %1093 = vmatpush1.bf16.msra.mxu0 %v818
      %1094 = vmatprep.subr.bf16.mxu0 %v821
      %1095 = vmatpush1.bf16.msra.mxu0 %v820
      %1096 = vmatprep.subr.bf16.mxu0 %v823
      %1097 = vmatpush1.bf16.msra.mxu0 %v822
      %1098 = vmatprep.subr.bf16.mxu0 %v825
      %1099 = vmatpush1.bf16.msra.mxu0 %v824
      %1100 = vmatprep.subr.bf16.mxu0 %v827
      %1101 = vmatpush1.bf16.msra.mxu0 %v826
      %1102 = vmatprep.subr.bf16.mxu0 %v829
      %1103 = vmatpush1.bf16.msra.mxu0 %v828
      %1104 = vmatprep.subr.bf16.mxu0 %v831
      %1105 = vmatpush1.bf16.msra.mxu0 %v830
      %1106 = vmatprep.subr.bf16.mxu0 %v833
      %1107 = vmatpush1.bf16.msra.mxu0 %v832
      %1108 = vmatprep.subr.bf16.mxu0 %v835
      %1109 = vmatpush1.bf16.msra.mxu0 %v834
      %1110 = vmatprep.subr.bf16.mxu0 %v837
      %1111 = vmatpush1.bf16.msra.mxu0 %v836
      %1112 = vmatprep.subr.bf16.mxu0 %v839
      %1113 = vmatpush1.bf16.msra.mxu0 %v838
      %1114 = vmatprep.subr.bf16.mxu0 %v841
      %1115 = vmatpush1.bf16.msra.mxu0 %v840
      %1116 = vmatprep.subr.bf16.mxu0 %v843
      %1117 = vmatpush1.bf16.msra.mxu0 %v842
      %1118 = vmatprep.subr.bf16.mxu0 %v845
      %1119 = vmatpush1.bf16.msra.mxu0 %v844
      %1120 = vmatprep.subr.bf16.mxu0 %v847
      %1121 = vmatpush1.bf16.msra.mxu0 %v846
      %1122 = vmatprep.subr.bf16.mxu0 %v849
      %1123 = vmatpush1.bf16.msra.mxu0 %v848
      %1124 = vmatprep.mubr.bf16.mxu0 %v339
      %1125 = vmatmul.mubr.bf16.gmra.mrb[0].mxu0 %v338
      %v1126 = vpop.f32.mrb[0].mxu0
      %v1127 = vadd.f32 %v1054, %v1126
      %v1128 = vpop.f32.mrb[0].mxu0
      %v1129 = vadd.f32 %v1056, %v1128
      %v1130 = vpop.f32.mrb[0].mxu0
      %v1131 = vadd.f32 %v1058, %v1130
      %v1132 = vpop.f32.mrb[0].mxu0
      %v1133 = vadd.f32 %v1060, %v1132
      %1134 = vmatprep.mubr.bf16.mxu0 %v345
      %1135 = vmatmul.mubr.bf16.gmra.mrb[0].mxu0 %v344
      %v1136 = vpop.f32.mrb[0].mxu0
      %v1137 = vadd.f32 %v1064, %v1136
      %v1138 = vpop.f32.mrb[0].mxu0
      %v1139 = vadd.f32 %v1066, %v1138
      %v1140 = vpop.f32.mrb[0].mxu0
      %v1141 = vadd.f32 %v1068, %v1140
      %v1142 = vpop.f32.mrb[0].mxu0
      %v1143 = vadd.f32 %v1070, %v1142
      %1144 = vmatprep.mubr.bf16.mxu0 %v351
      %1145 = vmatmul.mubr.bf16.gmra.mrb[0].mxu0 %v350
      %v1146 = vpop.f32.mrb[0].mxu0
      %v1147 = vadd.f32 %v1074, %v1146
      %v1148 = vpop.f32.mrb[0].mxu0
      %v1149 = vadd.f32 %v1076, %v1148
      %v1150 = vpop.f32.mrb[0].mxu0
      %v1151 = vadd.f32 %v1078, %v1150
      %v1152 = vpop.f32.mrb[0].mxu0
      %v1153 = vadd.f32 %v1080, %v1152
      %1154 = vmatprep.mubr.bf16.mxu0 %v357
      %1155 = vmatmul.mubr.bf16.gmra.mrb[0].mxu0 %v356
      %v1156 = vpop.f32.mrb[0].mxu0
      %v1157 = vadd.f32 %v1084, %v1156
      %v1158 = vpop.f32.mrb[0].mxu0
      %v1159 = vadd.f32 %v1086, %v1158
      %v1160 = vpop.f32.mrb[0].mxu0
      %v1161 = vadd.f32 %v1088, %v1160
      %v1162 = vpop.f32.mrb[0].mxu0
      %v1163 = vadd.f32 %v1090, %v1162
      %1164 = vdwg.mxu0
      %v1165 = vmax.f32 %v1127, 0.0
      %v1166 = vmax.f32 %v1129, 0.0
      %v1167 = vmax.f32 %v1131, 0.0
      %v1168 = vmax.f32 %v1133, 0.0
      %v1169 = vmax.f32 %v1137, 0.0
      %v1170 = vmax.f32 %v1139, 0.0
      %v1171 = vmax.f32 %v1141, 0.0
      %v1172 = vmax.f32 %v1143, 0.0
      %v1173 = vmax.f32 %v1147, 0.0
      %v1174 = vmax.f32 %v1149, 0.0
      %v1175 = vmax.f32 %v1151, 0.0
      %v1176 = vmax.f32 %v1153, 0.0
      %v1177 = vmax.f32 %v1157, 0.0
      %v1178 = vmax.f32 %v1159, 0.0
      %v1179 = vmax.f32 %v1161, 0.0
      %v1180 = vmax.f32 %v1163, 0.0
      %v1181 = vpack.c.bf16 %v1167, %v1165
      %v1182 = vpack.c.bf16 %v1168, %v1166
      %v1183 = vpack.c.bf16 %v1171, %v1169
      %v1184 = vpack.c.bf16 %v1172, %v1170
      %v1185 = vpack.c.bf16 %v1175, %v1173
      %v1186 = vpack.c.bf16 %v1176, %v1174
      %v1187 = vpack.c.bf16 %v1179, %v1177
      %v1188 = vpack.c.bf16 %v1180, %v1178
      %v1189 = vld [vmem:[%s3] sm:$0xf]
      %v1190 = vld [vmem:[%s3 + $0x4] sm:$0xf]
      %v1191 = vld [vmem:[%s3 + $0x8] sm:$0xf]
      %v1192 = vld [vmem:[%s3 + $0xc] sm:$0xf]
      %v1193 = vld [vmem:[%s3 + $0x10] sm:$0xf]
      %v1194 = vld [vmem:[%s3 + $0x14] sm:$0xf]
      %v1195 = vld [vmem:[%s3 + $0x18] sm:$0xf]
      %v1196 = vld [vmem:[%s3 + $0x1c] sm:$0xf]
      %v1197 = vld [vmem:[%s3 + $0x20] sm:$0xf]
      %v1198 = vld [vmem:[%s3 + $0x24] sm:$0xf]
      %v1199 = vld [vmem:[%s3 + $0x28] sm:$0xf]
      %v1200 = vld [vmem:[%s3 + $0x2c] sm:$0xf]
      %v1201 = vld [vmem:[%s3 + $0x30] sm:$0xf]
      %v1202 = vld [vmem:[%s3 + $0x34] sm:$0xf]
      %v1203 = vld [vmem:[%s3 + $0x38] sm:$0xf]
      %v1204 = vld [vmem:[%s3 + $0x3c] sm:$0xf]
      %v1205 = vld [vmem:[%s3 + $0x40] sm:$0xf]
      %v1206 = vld [vmem:[%s3 + $0x44] sm:$0xf]
      %v1207 = vld [vmem:[%s3 + $0x48] sm:$0xf]
      %v1208 = vld [vmem:[%s3 + $0x4c] sm:$0xf]
      %v1209 = vld [vmem:[%s3 + $0x50] sm:$0xf]
      %v1210 = vld [vmem:[%s3 + $0x54] sm:$0xf]
      %v1211 = vld [vmem:[%s3 + $0x58] sm:$0xf]
      %v1212 = vld [vmem:[%s3 + $0x5c] sm:$0xf]
      %v1213 = vld [vmem:[%s3 + $0x60] sm:$0xf]
      %v1214 = vld [vmem:[%s3 + $0x64] sm:$0xf]
      %v1215 = vld [vmem:[%s3 + $0x68] sm:$0xf]
      %v1216 = vld [vmem:[%s3 + $0x6c] sm:$0xf]
      %v1217 = vld [vmem:[%s3 + $0x70] sm:$0xf]
      %v1218 = vld [vmem:[%s3 + $0x74] sm:$0xf]
      %v1219 = vld [vmem:[%s3 + $0x78] sm:$0xf]
      %v1220 = vld [vmem:[%s3 + $0x7c] sm:$0xf]
      %v1221 = vld [vmem:[%s4] sm:$0x1]
      %v1223 = vlaneseq
      %v1224 = vshrl.u32 %v1223, 7
      %v1225 = vsub.s32 0, %v1224
      %v1226 = vrot.slane %v1221, %v1225
      %v1260 = vunpack.c.l.b16 %v1189
      %v1261 = vunpack.c.l.b16 %v1190
      %v1262 = vunpack.c.l.b16 %v1191
      %v1263 = vunpack.c.l.b16 %v1192
      %v1264 = vunpack.c.l.b16 %v1193
      %v1265 = vunpack.c.l.b16 %v1194
      %v1266 = vunpack.c.l.b16 %v1195
      %v1267 = vunpack.c.l.b16 %v1196
      %v1268 = vunpack.c.l.b16 %v1197
      %v1269 = vunpack.c.l.b16 %v1198
      %v1270 = vunpack.c.l.b16 %v1199
      %v1271 = vunpack.c.l.b16 %v1200
      %v1272 = vunpack.c.l.b16 %v1201
      %v1273 = vunpack.c.l.b16 %v1202
      %v1274 = vunpack.c.l.b16 %v1203
      %v1275 = vunpack.c.l.b16 %v1204
      %v1276 = vunpack.c.l.b16 %v1205
      %v1277 = vunpack.c.l.b16 %v1206
      %v1278 = vunpack.c.l.b16 %v1207
      %v1279 = vunpack.c.l.b16 %v1208
      %v1280 = vunpack.c.l.b16 %v1209
      %v1281 = vunpack.c.l.b16 %v1210
      %v1282 = vunpack.c.l.b16 %v1211
      %v1283 = vunpack.c.l.b16 %v1212
      %v1284 = vunpack.c.l.b16 %v1213
      %v1285 = vunpack.c.l.b16 %v1214
      %v1286 = vunpack.c.l.b16 %v1215
      %v1287 = vunpack.c.l.b16 %v1216
      %v1288 = vunpack.c.l.b16 %v1217
      %v1289 = vunpack.c.l.b16 %v1218
      %v1290 = vunpack.c.l.b16 %v1219
      %v1291 = vunpack.c.l.b16 %v1220
      %v1292 = vpack.c.b16 %v1261, %v1260
      %v1293 = vpack.c.b16 %v1263, %v1262
      %v1294 = vpack.c.b16 %v1265, %v1264
      %v1295 = vpack.c.b16 %v1267, %v1266
      %v1296 = vpack.c.b16 %v1269, %v1268
      %v1297 = vpack.c.b16 %v1271, %v1270
      %v1298 = vpack.c.b16 %v1273, %v1272
      %v1299 = vpack.c.b16 %v1275, %v1274
      %v1300 = vpack.c.b16 %v1277, %v1276
      %v1301 = vpack.c.b16 %v1279, %v1278
      %v1302 = vpack.c.b16 %v1281, %v1280
      %v1303 = vpack.c.b16 %v1283, %v1282
      %v1304 = vpack.c.b16 %v1285, %v1284
      %v1305 = vpack.c.b16 %v1287, %v1286
      %v1306 = vpack.c.b16 %v1289, %v1288
      %v1307 = vpack.c.b16 %v1291, %v1290
      %1324 = vmatprep.subr.bf16.mxu0 0
      %1325 = vmatpush1.bf16.msra.mxu0 %v1292
      %1326 = vmatprep.subr.bf16.mxu0 0
      %1327 = vmatpush1.bf16.msra.mxu0 %v1293
      %1328 = vmatprep.subr.bf16.mxu0 0
      %1329 = vmatpush1.bf16.msra.mxu0 %v1294
      %1330 = vmatprep.subr.bf16.mxu0 0
      %1331 = vmatpush1.bf16.msra.mxu0 %v1295
      %1332 = vmatprep.subr.bf16.mxu0 0
      %1333 = vmatpush1.bf16.msra.mxu0 %v1296
      %1334 = vmatprep.subr.bf16.mxu0 0
      %1335 = vmatpush1.bf16.msra.mxu0 %v1297
      %1336 = vmatprep.subr.bf16.mxu0 0
      %1337 = vmatpush1.bf16.msra.mxu0 %v1298
      %1338 = vmatprep.subr.bf16.mxu0 0
      %1339 = vmatpush1.bf16.msra.mxu0 %v1299
      %1340 = vmatprep.subr.bf16.mxu0 0
      %1341 = vmatpush1.bf16.msra.mxu0 %v1300
      %1342 = vmatprep.subr.bf16.mxu0 0
      %1343 = vmatpush1.bf16.msra.mxu0 %v1301
      %1344 = vmatprep.subr.bf16.mxu0 0
      %1345 = vmatpush1.bf16.msra.mxu0 %v1302
      %1346 = vmatprep.subr.bf16.mxu0 0
      %1347 = vmatpush1.bf16.msra.mxu0 %v1303
      %1348 = vmatprep.subr.bf16.mxu0 0
      %1349 = vmatpush1.bf16.msra.mxu0 %v1304
      %1350 = vmatprep.subr.bf16.mxu0 0
      %1351 = vmatpush1.bf16.msra.mxu0 %v1305
      %1352 = vmatprep.subr.bf16.mxu0 0
      %1353 = vmatpush1.bf16.msra.mxu0 %v1306
      %1354 = vmatprep.subr.bf16.mxu0 0
      %1355 = vmatpush1.bf16.msra.mxu0 %v1307
      %1356 = vmatprep.mubr.bf16.mxu0 %v1182
      %1357 = vmatmul.mubr.bf16.gmra.mrb[0].mxu0 %v1181
      %v1358 = vpop.f32.mrb[0].mxu0
      %v1359 = vadd.f32 %v1226, %v1358
      %v1360 = vpop.f32.mrb[0].mxu0
      %v1361 = vpop.f32.mrb[0].mxu0
      %v1362 = vadd.f32 %v1226, %v1361
      %v1363 = vpop.f32.mrb[0].mxu0
      %1364 = vmatprep.mubr.bf16.mxu0 %v1184
      %1365 = vmatmul.mubr.bf16.gmra.mrb[0].mxu0 %v1183
      %v1366 = vpop.f32.mrb[0].mxu0
      %v1367 = vadd.f32 %v1226, %v1366
      %v1368 = vpop.f32.mrb[0].mxu0
      %v1369 = vpop.f32.mrb[0].mxu0
      %v1370 = vadd.f32 %v1226, %v1369
      %v1371 = vpop.f32.mrb[0].mxu0
      %1372 = vmatprep.mubr.bf16.mxu0 %v1186
      %1373 = vmatmul.mubr.bf16.gmra.mrb[0].mxu0 %v1185
      %v1374 = vpop.f32.mrb[0].mxu0
      %v1375 = vadd.f32 %v1226, %v1374
      %v1376 = vpop.f32.mrb[0].mxu0
      %v1377 = vpop.f32.mrb[0].mxu0
      %v1378 = vadd.f32 %v1226, %v1377
      %v1379 = vpop.f32.mrb[0].mxu0
      %1380 = vmatprep.mubr.bf16.mxu0 %v1188
      %1381 = vmatmul.mubr.bf16.gmra.mrb[0].mxu0 %v1187
      %v1382 = vpop.f32.mrb[0].mxu0
      %v1383 = vadd.f32 %v1226, %v1382
      %v1384 = vpop.f32.mrb[0].mxu0
      %v1385 = vpop.f32.mrb[0].mxu0
      %v1386 = vadd.f32 %v1226, %v1385
      %v1387 = vpop.f32.mrb[0].mxu0
      %1388 = vdwg.mxu0
      %v1389 = vmax.f32 %v1359, 0.0
      %v1390 = vmax.f32 %v1362, 0.0
      %v1391 = vmax.f32 %v1367, 0.0
      %v1392 = vmax.f32 %v1370, 0.0
      %v1393 = vmax.f32 %v1375, 0.0
      %v1394 = vmax.f32 %v1378, 0.0
      %v1395 = vmax.f32 %v1383, 0.0
      %v1396 = vmax.f32 %v1386, 0.0
      %v1397 = vpack.c.bf16 %v1390, %v1389
      %v1398 = vpack.c.bf16 %v1392, %v1391
      %v1399 = vpack.c.bf16 %v1394, %v1393
      %v1400 = vpack.c.bf16 %v1396, %v1395
      %v1401 = vld [vmem:[%s5] sm:$0xf]
      %v1402 = vld [vmem:[%s5 + $0x4] sm:$0xf]
      %v1403 = vld [vmem:[%s5 + $0x8] sm:$0xf]
      %v1404 = vld [vmem:[%s5 + $0xc] sm:$0xf]
      %v1405 = vld [vmem:[%s5 + $0x10] sm:$0xf]
      %v1406 = vld [vmem:[%s5 + $0x14] sm:$0xf]
      %v1407 = vld [vmem:[%s5 + $0x18] sm:$0xf]
      %v1408 = vld [vmem:[%s5 + $0x1c] sm:$0xf]
      %v1409 = vld [vmem:[%s5 + $0x20] sm:$0xf]
      %v1410 = vld [vmem:[%s5 + $0x24] sm:$0xf]
      %v1411 = vld [vmem:[%s5 + $0x28] sm:$0xf]
      %v1412 = vld [vmem:[%s5 + $0x2c] sm:$0xf]
      %v1413 = vld [vmem:[%s5 + $0x30] sm:$0xf]
      %v1414 = vld [vmem:[%s5 + $0x34] sm:$0xf]
      %v1415 = vld [vmem:[%s5 + $0x38] sm:$0xf]
      %v1416 = vld [vmem:[%s5 + $0x3c] sm:$0xf]
      %v1417 = vld [vmem:[%s6] sm:$0x1]
      %v1419 = vlaneseq
      %v1420 = vshrl.u32 %v1419, 7
      %v1421 = vsub.s32 0, %v1420
      %v1422 = vrot.slane %v1417, %v1421
      %v1440 = vunpack.c.l.b16 %v1401
      %v1441 = vunpack.c.l.b16 %v1402
      %v1442 = vunpack.c.l.b16 %v1403
      %v1443 = vunpack.c.l.b16 %v1404
      %v1444 = vunpack.c.l.b16 %v1405
      %v1445 = vunpack.c.l.b16 %v1406
      %v1446 = vunpack.c.l.b16 %v1407
      %v1447 = vunpack.c.l.b16 %v1408
      %v1448 = vunpack.c.l.b16 %v1409
      %v1449 = vunpack.c.l.b16 %v1410
      %v1450 = vunpack.c.l.b16 %v1411
      %v1451 = vunpack.c.l.b16 %v1412
      %v1452 = vunpack.c.l.b16 %v1413
      %v1453 = vunpack.c.l.b16 %v1414
      %v1454 = vunpack.c.l.b16 %v1415
      %v1455 = vunpack.c.l.b16 %v1416
      %v1456 = vpack.c.b16 %v1441, %v1440
      %v1457 = vpack.c.b16 %v1443, %v1442
      %v1458 = vpack.c.b16 %v1445, %v1444
      %v1459 = vpack.c.b16 %v1447, %v1446
      %v1460 = vpack.c.b16 %v1449, %v1448
      %v1461 = vpack.c.b16 %v1451, %v1450
      %v1462 = vpack.c.b16 %v1453, %v1452
      %v1463 = vpack.c.b16 %v1455, %v1454
      %1472 = vmatprep.subr.bf16.mxu0 0
      %1473 = vmatpush1.bf16.msra.mxu0 %v1456
      %1474 = vmatprep.subr.bf16.mxu0 0
      %1475 = vmatpush1.bf16.msra.mxu0 %v1457
      %1476 = vmatprep.subr.bf16.mxu0 0
      %1477 = vmatpush1.bf16.msra.mxu0 %v1458
      %1478 = vmatprep.subr.bf16.mxu0 0
      %1479 = vmatpush1.bf16.msra.mxu0 %v1459
      %1480 = vmatprep.subr.bf16.mxu0 0
      %1481 = vmatpush1.bf16.msra.mxu0 %v1460
      %1482 = vmatprep.subr.bf16.mxu0 0
      %1483 = vmatpush1.bf16.msra.mxu0 %v1461
      %1484 = vmatprep.subr.bf16.mxu0 0
      %1485 = vmatpush1.bf16.msra.mxu0 %v1462
      %1486 = vmatprep.subr.bf16.mxu0 0
      %1487 = vmatpush1.bf16.msra.mxu0 %v1463
      %1488 = vmatprep.subr.bf16.mxu0 0
      %1489 = vmatpush1.bf16.msra.mxu0 0
      %1490 = vmatprep.subr.bf16.mxu0 0
      %1491 = vmatpush1.bf16.msra.mxu0 0
      %1492 = vmatprep.subr.bf16.mxu0 0
      %1493 = vmatpush1.bf16.msra.mxu0 0
      %1494 = vmatprep.subr.bf16.mxu0 0
      %1495 = vmatpush1.bf16.msra.mxu0 0
      %1496 = vmatprep.subr.bf16.mxu0 0
      %1497 = vmatpush1.bf16.msra.mxu0 0
      %1498 = vmatprep.subr.bf16.mxu0 0
      %1499 = vmatpush1.bf16.msra.mxu0 0
      %1500 = vmatprep.subr.bf16.mxu0 0
      %1501 = vmatpush1.bf16.msra.mxu0 0
      %1502 = vmatprep.subr.bf16.mxu0 0
      %1503 = vmatpush1.bf16.msra.mxu0 0
      %1504 = vmatprep.mubr.bf16.mxu0 0
      %1505 = vmatmul.mubr.bf16.gmra.mrb[0].mxu0 %v1397
      %v1506 = vpop.f32.mrb[0].mxu0
      %v1507 = vadd.f32 %v1422, %v1506
      %v1508 = vpop.f32.mrb[0].mxu0
      %v1509 = vpop.f32.mrb[0].mxu0
      %v1510 = vadd.f32 %v1422, %v1509
      %v1511 = vpop.f32.mrb[0].mxu0
      %1512 = vmatprep.mubr.bf16.mxu0 0
      %1513 = vmatmul.mubr.bf16.gmra.mrb[0].mxu0 %v1398
      %v1514 = vpop.f32.mrb[0].mxu0
      %v1515 = vadd.f32 %v1422, %v1514
      %v1516 = vpop.f32.mrb[0].mxu0
      %v1517 = vpop.f32.mrb[0].mxu0
      %v1518 = vadd.f32 %v1422, %v1517
      %v1519 = vpop.f32.mrb[0].mxu0
      %1520 = vmatprep.mubr.bf16.mxu0 0
      %1521 = vmatmul.mubr.bf16.gmra.mrb[0].mxu0 %v1399
      %v1522 = vpop.f32.mrb[0].mxu0
      %v1523 = vadd.f32 %v1422, %v1522
      %v1524 = vpop.f32.mrb[0].mxu0
      %v1525 = vpop.f32.mrb[0].mxu0
      %v1526 = vadd.f32 %v1422, %v1525
      %v1527 = vpop.f32.mrb[0].mxu0
      %1528 = vmatprep.mubr.bf16.mxu0 0
      %1529 = vmatmul.mubr.bf16.gmra.mrb[0].mxu0 %v1400
      %v1530 = vpop.f32.mrb[0].mxu0
      %v1531 = vadd.f32 %v1422, %v1530
      %v1532 = vpop.f32.mrb[0].mxu0
      %v1533 = vpop.f32.mrb[0].mxu0
      %v1534 = vadd.f32 %v1422, %v1533
      %v1535 = vpop.f32.mrb[0].mxu0
      %1536 = vdwg.mxu0
      %1537 = vst [vmem:[%s283] sm:$0xff] %v1507
      %1538 = vst [vmem:[%s283 + $0x8] sm:$0xff] %v1510
      %1539 = vst [vmem:[%s283 + $0x10] sm:$0xff] %v1515
      %1540 = vst [vmem:[%s283 + $0x18] sm:$0xff] %v1518
      %1541 = vst [vmem:[%s283 + $0x20] sm:$0xff] %v1523
      %1542 = vst [vmem:[%s283 + $0x28] sm:$0xff] %v1526
      %1543 = vst [vmem:[%s283 + $0x30] sm:$0xff] %v1531
      %1544 = vst [vmem:[%s283 + $0x38] sm:$0xff] %v1534
      %s1545 = smul.u32 8, %s18
      %p1546 = scmp.lt.s32.totalorder %s1545, 15
      %s1547 = scalar_select %p1546, %s1545, 15
      %s1548 = smul.addr %s1547, 8
      %s1549 = scalar_lea.vmem %s7, %s1548
      // Predicated region
      $region49: #{emotion_classifier_forward.1} parent=47 // pred_check
        %p1550 = pneg %p188
      $region50: #{emotion_classifier_forward.1} parent=47 // pred_check_branch
        %1552 = sbr.rel (%p1550) target = $region52
      $region51: #{emotion_classifier_forward.1} parent=47 // pred_region
        %s1553 = smul.u32 8, %s18
      $region52: #{emotion_classifier_forward.1} parent=47 // pred_fallthru
        _
    $region48: #{emotion_classifier_forward.1} parent=5 // pred_fallthru
      _
    %p1554 = scmp.le.s32.totalorder 2, %s13
    // Predicated region
    $region53: #{emotion_classifier_forward.1} parent=5 // pred_check
      %p1555 = pneg %p1554
    $region54: #{emotion_classifier_forward.1} parent=5 // pred_check_branch
      %1557 = sbr.rel (%p1555) target = $region56
    $region55: #{emotion_classifier_forward.1} parent=5 // pred_region
      %s1558 = ssub.s32 %s13, 2
      // Predicated region
      $region57: #{emotion_classifier_forward.1} parent=55 // pred_check
        %p1559 = pneg %p194
      $region58: #{emotion_classifier_forward.1} parent=55 // pred_check_branch
        %1561 = sbr.rel (%p1559) target = $region60
      $region59: #{emotion_classifier_forward.1} parent=55 // pred_region
        %s1562 = smul.u32 8, %s19
        %p1563 = scmp.lt.s32.totalorder %s1562, 15
        %s1564 = scalar_select %p1563, %s1562, 15
        %s1565 = smul.addr %s1564, 8
        %s1566 = scalar_lea.vmem %s7, %s1565
      $region60: #{emotion_classifier_forward.1} parent=55 // pred_fallthru
        _
    $region56: #{emotion_classifier_forward.1} parent=5 // pred_fallthru
      _
  $region6: #{emotion_classifier_forward.1} parent=0 // loop_footer
    %s17 = sadd.s32 1, %s13
  $region7: #{emotion_classifier_forward.1} parent=0 // loop_footer_branch
    %12 = sbr.rel target = $region3
  $region8: #{emotion_classifier_forward.1} parent=0 // loop_exit
    _

</llo_original>
